<compile_context>
chip_gen: v7x
topology: tpu7x:2x2x1
jax: 0.10.0
libtpu: 0.0.40
codegen_flags: <defaults>
</compile_context>

<pallas_src>
import math

import jax
import jax.numpy as jnp
from jax.experimental import pallas as pl
from jax.experimental.pallas import tpu as pltpu

_INV_SQRT2 = 1.0 / math.sqrt(2.0)


def ffn_kernel(x_ref, w1_ref, b1_ref, w2_ref, b2_ref, o_ref, acc_ref):
    # x_ref : (tm, n_embd_p)   w1_ref: (n_embd_p, tk)   b1_ref: (1, tk)
    # w2_ref: (tk, n_embd_p)   b2_ref: (1, n_embd_p)
    # o_ref : (tm, n_embd_p)   acc_ref: (tm, n_embd_p) f32 scratch
    k = pl.program_id(1)

    @pl.when(k == 0)
    def _init():
        acc_ref[...] = jnp.zeros_like(acc_ref)

    x = x_ref[...]

    # First linear for this d_ff chunk (MXU, f32 accumulation).
    h = jnp.dot(x, w1_ref[...], preferred_element_type=jnp.float32)
    h = h + b1_ref[...].astype(jnp.float32)

    # Exact (erf-based) GELU -- matches torch.nn.GELU() default.
    h = 0.5 * h * (1.0 + jax.lax.erf(h * _INV_SQRT2))

    # Second linear chunk in the compute dtype (bf16 by default), accumulated
    # into the resident f32 scratch.
    acc_ref[...] += jnp.dot(
        h.astype(w2_ref.dtype), w2_ref[...], preferred_element_type=jnp.float32
    )

    @pl.when(k == pl.num_programs(1) - 1)
    def _finalize():
        y = acc_ref[...] + b2_ref[...].astype(jnp.float32)
        # Dropout is identity at inference time.
        o_ref[...] = y.astype(o_ref.dtype)


def _round_up(x, m):
    return (x + m - 1) // m * m


def _vmem_capacity_bytes():
    """Physical VMEM of the current generation; conservative fallback (v7x)."""
    try:
        return int(pltpu.get_tpu_info().vmem_capacity_bytes)
    except Exception:
        return 64 << 20


def _vmem_bytes_needed(tm, tk, n_embd_p, itemsize):
    # Double-buffered compute-dtype tiles.
    tiles = tm * n_embd_p + n_embd_p * tk + tk * n_embd_p + tm * n_embd_p
    biases = 16 * tk + 16 * n_embd_p  # biases stay f32, sublane-padded
    acc = tm * n_embd_p * 4           # resident f32 accumulator
    inter = tm * tk * 4               # h intermediate (compiler scratch headroom)
    return 2 * tiles * itemsize + 2 * biases * 4 + acc + inter


def make_feed_forward(w1, b1, w2, b2, *, compute_dtype=jnp.bfloat16, tm=None, tk=None):
    """Build a fused FFN callable with weights padded/cast exactly once.

    w1: (n_embd, d_ff), b1: (d_ff,), w2: (d_ff, n_embd), b2: (n_embd,)
    (i.e. PyTorch nn.Linear weights transposed to (in_features, out_features)).
    compute_dtype: MXU input dtype (bf16 default); accumulation, bias add and
    GELU are always f32.  Biases are kept in their original (f32) dtype.
    """
    n_embd, d_ff = w1.shape
    assert w2.shape == (d_ff, n_embd)
    assert b1.shape == (d_ff,) and b2.shape == (n_embd,)

    cd = jnp.dtype(compute_dtype) if compute_dtype is not None else jnp.dtype(w1.dtype)
    itemsize = cd.itemsize
    sub = 16 if itemsize < 4 else 8  # bf16 packs 16 rows per vreg

    vmem_cap = _vmem_capacity_bytes()
    budget = int(0.75 * vmem_cap)
    big_vmem = vmem_cap >= (100 << 20)  # v5e/v6e (128 MiB) vs v7x (64 MiB)

    n_embd_p = _round_up(n_embd, 128)

    # d_ff reduction chunk (lane-dense, multiple of 128).
    tk_c = 512 if tk is None else tk
    tk_c = min(_round_up(tk_c, 128), _round_up(d_ff, 128))
    # Keep the weight k-blocks themselves well under the VMEM budget.
    while tk_c > 128 and 4 * n_embd_p * tk_c * itemsize > budget // 2:
        tk_c = max(128, _round_up(tk_c // 2, 128))

    d_ff_p = _round_up(d_ff, tk_c)

    # One-time padding + cast of weights (kept out of the per-call hot path).
    w1_p = jnp.pad(w1.astype(cd), ((0, n_embd_p - n_embd), (0, d_ff_p - d_ff)))
    w2_p = jnp.pad(w2.astype(cd), ((0, d_ff_p - d_ff), (0, n_embd_p - n_embd)))
    b1_p = jnp.pad(b1.reshape(1, d_ff), ((0, 0), (0, d_ff_p - d_ff)))
    b2_p = jnp.pad(b2.reshape(1, n_embd), ((0, 0), (0, n_embd_p - n_embd)))

    base_tm = tm if tm is not None else (1024 if big_vmem else 512)

    def fn(x):
        B, T, ne = x.shape
        assert ne == n_embd
        out_dtype = x.dtype  # output in the caller's dtype (matches torch module)
        M = B * T

        # --- per-call M tile selection --------------------------------------
        tm_c = min(base_tm, _round_up(M, sub))
        # v7x has 2 TensorCores: make sure the parallel M axis has >= 2 tiles.
        if not big_vmem and _round_up(M, tm_c) // tm_c < 2 and M > sub:
            tm_half = _round_up(pl.cdiv(M, 2), sub)
            if _round_up(M, tm_half) // tm_half >= 2:
                tm_c = tm_half
        # Shrink until double-buffered tiles + f32 accumulator fit VMEM.
        while tm_c > sub and _vmem_bytes_needed(tm_c, tk_c, n_embd_p, itemsize) > budget:
            tm_c = max(sub, _round_up(tm_c // 2, sub))

        M_p = _round_up(M, tm_c)
        grid = (M_p // tm_c, d_ff_p // tk_c)

        x2 = x.astype(cd).reshape(M, n_embd)
        x2 = jnp.pad(x2, ((0, M_p - M), (0, n_embd_p - n_embd)))

        needed = _vmem_bytes_needed(tm_c, tk_c, n_embd_p, itemsize)
        vmem_limit = min(max(int(needed * 1.2), 32 << 20), int(0.95 * vmem_cap))

        cost = pl.CostEstimate(
            flops=int(4 * M_p * n_embd_p * d_ff_p),
            transcendentals=int(M_p * d_ff_p),
            bytes_accessed=int(
                (2 * M_p * n_embd_p) * jnp.dtype(out_dtype).itemsize
                + grid[0] * (n_embd_p * d_ff_p + d_ff_p * n_embd_p) * itemsize
                + (d_ff_p + n_embd_p) * 4
            ),
        )

        out = pl.pallas_call(
            ffn_kernel,
            out_shape=jax.ShapeDtypeStruct((M_p, n_embd_p), out_dtype),
            grid_spec=pltpu.PrefetchScalarGridSpec(
                num_scalar_prefetch=0,
                grid=grid,
                in_specs=[
                    pl.BlockSpec((tm_c, n_embd_p), lambda i, k: (i, 0)),   # x (const over k)
                    pl.BlockSpec((n_embd_p, tk_c), lambda i, k: (0, k)),   # W1 k-block
                    pl.BlockSpec((1, tk_c), lambda i, k: (0, k)),          # b1 k-block
                    pl.BlockSpec((tk_c, n_embd_p), lambda i, k: (k, 0)),   # W2 k-block
                    pl.BlockSpec((1, n_embd_p), lambda i, k: (0, 0)),      # b2 (resident)
                ],
                out_specs=pl.BlockSpec((tm_c, n_embd_p), lambda i, k: (i, 0)),
                scratch_shapes=[pltpu.VMEM((tm_c, n_embd_p), jnp.float32)],
            ),
            compiler_params=pltpu.CompilerParams(
                dimension_semantics=("parallel", "arbitrary"),
                vmem_limit_bytes=vmem_limit,
            ),
            cost_estimate=cost,
        )(x2, w1_p, b1_p, w2_p, b2_p)

        return out[:M, :n_embd].reshape(B, T, n_embd)

    return fn


def feed_forward(x, w1, b1, w2, b2, *, compute_dtype=jnp.bfloat16, tm=None, tk=None):
    """Convenience one-shot wrapper (pads weights per call; prefer
    make_feed_forward() when calling repeatedly)."""
    return make_feed_forward(w1, b1, w2, b2, compute_dtype=compute_dtype, tm=tm, tk=tk)(x)


def init_params(key, n_embd, d_ff_factor, dtype=jnp.float32):
    """Deterministic init mimicking torch.nn.Linear (U[-1/sqrt(fan_in), 1/sqrt(fan_in)]).
    Weights are returned as (in_features, out_features)."""
    d_ff = n_embd * d_ff_factor
    k1, k2, k3, k4 = jax.random.split(key, 4)
    bound1 = 1.0 / math.sqrt(n_embd)
    bound2 = 1.0 / math.sqrt(d_ff)
    w1 = jax.random.uniform(k1, (n_embd, d_ff), dtype, -bound1, bound1)
    b1 = jax.random.uniform(k2, (d_ff,), dtype, -bound1, bound1)
    w2 = jax.random.uniform(k3, (d_ff, n_embd), dtype, -bound2, bound2)
    b2 = jax.random.uniform(k4, (n_embd,), dtype, -bound2, bound2)
    return w1, b1, w2, b2


def _reference(x, w1, b1, w2, b2):
    B, T, n_embd = x.shape
    h = x.reshape(-1, n_embd) @ w1 + b1
    h = 0.5 * h * (1.0 + jax.lax.erf(h / math.sqrt(2.0)))
    return (h @ w2 + b2).reshape(B, T, n_embd)


if __name__ == "__main__":
    key = jax.random.PRNGKey(0)
    kx, kp, kx2 = jax.random.split(key, 3)

    # Small shapes: batch=2, seq=8, n_embd=32, d_ff_factor=4 -> d_ff=128.
    B, T, n_embd, d_ff_factor = 2, 8, 32, 4
    x = jax.random.normal(kx, (B, T, n_embd), dtype=jnp.float32)
    w1, b1, w2, b2 = init_params(kp, n_embd, d_ff_factor)
    y_ref = _reference(x, w1, b1, w2, b2)

    # Default (bf16 MXU) path: weights padded/cast once, looser tolerance due
    # to bf16 rounding of x / W1 / W2 (accumulation stays f32).
    ffn_bf16 = make_feed_forward(w1, b1, w2, b2)  # compute_dtype=bf16 default
    y = jax.block_until_ready(ffn_bf16(x))
    assert y.dtype == x.dtype
    assert jnp.allclose(y, y_ref, atol=2e-2, rtol=2e-2), "mismatch vs reference (bf16)"

    # Full-f32 path: exact-precision check of the kernel math.
    ffn_f32 = make_feed_forward(w1, b1, w2, b2, compute_dtype=jnp.float32)
    y32 = jax.block_until_ready(ffn_f32(x))
    assert jnp.allclose(y32, y_ref, atol=1e-5, rtol=1e-5), "mismatch vs reference (f32)"

    # Odd M (not divisible by tile / sublane): exercises the M-padding path.
    x_odd = jax.random.normal(kx2, (3, 5, n_embd), dtype=jnp.float32)
    y_odd_ref = _reference(x_odd, w1, b1, w2, b2)
    y_odd = jax.block_until_ready(ffn_bf16(x_odd))
    assert jnp.allclose(y_odd, y_odd_ref, atol=2e-2, rtol=2e-2), "mismatch (padded M, bf16)"
    y_odd32 = jax.block_until_ready(ffn_f32(x_odd))
    assert jnp.allclose(y_odd32, y_odd_ref, atol=1e-5, rtol=1e-5), "mismatch (padded M, f32)"

    print("KERNEL_OK")
</pallas_src>

<mosaic_0001>
module attributes {stable_mosaic.version = 11 : i64} {
  func.func @ffn_kernel(%arg0: i32, %arg1: i32, %arg2: memref<16x128xbf16, #tpu.memory_space<vmem>>, %arg3: memref<128x128xbf16, #tpu.memory_space<vmem>>, %arg4: memref<1x128xf32, #tpu.memory_space<vmem>>, %arg5: memref<128x128xbf16, #tpu.memory_space<vmem>>, %arg6: memref<1x128xf32, #tpu.memory_space<vmem>>, %arg7: memref<16x128xf32, #tpu.memory_space<vmem>>, %arg8: memref<16x128xf32, #tpu.memory_space<vmem>>) attributes {dimension_semantics = [#tpu.dimension_semantics<parallel>, #tpu.dimension_semantics<arbitrary>], iteration_bounds = array<i64: 1, 1>, scalar_prefetch = 0 : i64, scratch_operands = 1 : i64, tpu.core_type = #tpu.core_type<tc>, window_params = [{transform_indices = @transform_0, window_bounds = array<i64: 16, 128>}, {transform_indices = @transform_1, window_bounds = array<i64: 128, 128>}, {transform_indices = @transform_2, window_bounds = array<i64: 1, 128>}, {transform_indices = @transform_3, window_bounds = array<i64: 128, 128>}, {pipeline_mode = #tpu.pipeline_mode<synchronous>, transform_indices = @transform_4, window_bounds = array<i64: 1, 128>}, {transform_indices = @transform_5, window_bounds = array<i64: 16, 128>}]} {
    %c0_i32 = arith.constant 0 : i32
    %0 = arith.cmpi eq, %arg1, %c0_i32 : i32
    %1 = arith.extui %0 : i1 to i32
    %c0_i32_0 = arith.constant 0 : i32
    %2 = arith.cmpi ne, %1, %c0_i32_0 : i32
    scf.if %2 {
      %cst_18 = arith.constant 0.000000e+00 : f32
      %26 = vector.broadcast %cst_18 : f32 to vector<16x128xf32>
      %c0_19 = arith.constant 0 : index
      %c0_20 = arith.constant 0 : index
      %27 = vector.load %arg8[%c0_19, %c0_20] : memref<16x128xf32, #tpu.memory_space<vmem>>, vector<16x128xf32>
      tpu.vector_store %arg8[%c0_19, %c0_20], %26 {strides = array<i32>} : memref<16x128xf32, #tpu.memory_space<vmem>>, vector<16x128xf32>,
    } else {
    }
    %c0 = arith.constant 0 : index
    %c0_1 = arith.constant 0 : index
    %3 = vector.load %arg2[%c0, %c0_1] : memref<16x128xbf16, #tpu.memory_space<vmem>>, vector<16x128xbf16>
    %c0_2 = arith.constant 0 : index
    %c0_3 = arith.constant 0 : index
    %4 = vector.load %arg3[%c0_2, %c0_3] : memref<128x128xbf16, #tpu.memory_space<vmem>>, vector<128x128xbf16>
    %cst = arith.constant dense<0.000000e+00> : vector<16x128xf32>
    %5 = tpu.matmul %3, %4, %cst {dimension_numbers = #tpu.dot_dimension_numbers<[1], [0], [0], [1], [0, 0, 1, 1], [], []>} : vector<16x128xbf16>, vector<128x128xbf16>, vector<16x128xf32> -> vector<16x128xf32>
    %c0_4 = arith.constant 0 : index
    %c0_5 = arith.constant 0 : index
    %6 = vector.load %arg4[%c0_4, %c0_5] : memref<1x128xf32, #tpu.memory_space<vmem>>, vector<1x128xf32>
    %7 = vector.broadcast %6 : vector<1x128xf32> to vector<16x128xf32>
    %8 = arith.addf %5, %7 : vector<16x128xf32>
    %cst_6 = arith.constant 5.000000e-01 : f32
    %9 = vector.broadcast %cst_6 : f32 to vector<16x128xf32>
    %10 = arith.mulf %9, %8 : vector<16x128xf32>
    %cst_7 = arith.constant 0.707106769 : f32
    %11 = vector.broadcast %cst_7 : f32 to vector<16x128xf32>
    %12 = arith.mulf %8, %11 : vector<16x128xf32>
    %13 = math.erf %12 : vector<16x128xf32>
    %cst_8 = arith.constant 1.000000e+00 : f32
    %14 = vector.broadcast %cst_8 : f32 to vector<16x128xf32>
    %15 = arith.addf %14, %13 : vector<16x128xf32>
    %16 = arith.mulf %10, %15 : vector<16x128xf32>
    %c0_9 = arith.constant 0 : index
    %c0_10 = arith.constant 0 : index
    %17 = vector.load %arg8[%c0_9, %c0_10] : memref<16x128xf32, #tpu.memory_space<vmem>>, vector<16x128xf32>
    %18 = arith.truncf %16 : vector<16x128xf32> to vector<16x128xbf16>
    %c0_11 = arith.constant 0 : index
    %c0_12 = arith.constant 0 : index
    %19 = vector.load %arg5[%c0_11, %c0_12] : memref<128x128xbf16, #tpu.memory_space<vmem>>, vector<128x128xbf16>
    %cst_13 = arith.constant dense<0.000000e+00> : vector<16x128xf32>
    %20 = tpu.matmul %18, %19, %cst_13 {dimension_numbers = #tpu.dot_dimension_numbers<[1], [0], [0], [1], [0, 0, 1, 1], [], []>} : vector<16x128xbf16>, vector<128x128xbf16>, vector<16x128xf32> -> vector<16x128xf32>
    %21 = arith.addf %17, %20 : vector<16x128xf32>
    %c0_14 = arith.constant 0 : index
    %c0_15 = arith.constant 0 : index
    %22 = vector.load %arg8[%c0_14, %c0_15] : memref<16x128xf32, #tpu.memory_space<vmem>>, vector<16x128xf32>
    tpu.vector_store %arg8[%c0_14, %c0_15], %21 {strides = array<i32>} : memref<16x128xf32, #tpu.memory_space<vmem>>, vector<16x128xf32>,
    %c0_i32_16 = arith.constant 0 : i32
    %23 = arith.cmpi eq, %arg1, %c0_i32_16 : i32
    %24 = arith.extui %23 : i1 to i32
    %c0_i32_17 = arith.constant 0 : i32
    %25 = arith.cmpi ne, %24, %c0_i32_17 : i32
    scf.if %25 {
      %c0_18 = arith.constant 0 : index
      %c0_19 = arith.constant 0 : index
      %26 = vector.load %arg8[%c0_18, %c0_19] : memref<16x128xf32, #tpu.memory_space<vmem>>, vector<16x128xf32>
      %c0_20 = arith.constant 0 : index
      %c0_21 = arith.constant 0 : index
      %27 = vector.load %arg6[%c0_20, %c0_21] : memref<1x128xf32, #tpu.memory_space<vmem>>, vector<1x128xf32>
      %28 = vector.broadcast %27 : vector<1x128xf32> to vector<16x128xf32>
      %29 = arith.addf %26, %28 : vector<16x128xf32>
      %c0_22 = arith.constant 0 : index
      %c0_23 = arith.constant 0 : index
      %30 = vector.load %arg7[%c0_22, %c0_23] : memref<16x128xf32, #tpu.memory_space<vmem>>, vector<16x128xf32>
      tpu.vector_store %arg7[%c0_22, %c0_23], %29 {strides = array<i32>} : memref<16x128xf32, #tpu.memory_space<vmem>>, vector<16x128xf32>,
    } else {
    }
    return
  }
  func.func @transform_0(%arg0: i32, %arg1: i32) -> (i32, i32) {
    %c0_i32 = arith.constant 0 : i32
    %c0_i32_0 = arith.constant 0 : i32
    return %arg0, %c0_i32 : i32, i32
  }
  func.func @transform_1(%arg0: i32, %arg1: i32) -> (i32, i32) {
    %c0_i32 = arith.constant 0 : i32
    %c0_i32_0 = arith.constant 0 : i32
    return %c0_i32, %arg1 : i32, i32
  }
  func.func @transform_2(%arg0: i32, %arg1: i32) -> (i32, i32) {
    %c0_i32 = arith.constant 0 : i32
    %c0_i32_0 = arith.constant 0 : i32
    return %c0_i32, %arg1 : i32, i32
  }
  func.func @transform_3(%arg0: i32, %arg1: i32) -> (i32, i32) {
    %c0_i32 = arith.constant 0 : i32
    %c0_i32_0 = arith.constant 0 : i32
    return %arg1, %c0_i32 : i32, i32
  }
  func.func @transform_4(%arg0: i32, %arg1: i32) -> (i32, i32) {
    %c0_i32 = arith.constant 0 : i32
    %c0_i32_0 = arith.constant 0 : i32
    %c0_i32_1 = arith.constant 0 : i32
    return %c0_i32, %c0_i32_0 : i32, i32
  }
  func.func @transform_5(%arg0: i32, %arg1: i32) -> (i32, i32) {
    %c0_i32 = arith.constant 0 : i32
    %c0_i32_0 = arith.constant 0 : i32
    return %arg0, %c0_i32 : i32, i32
  }
}

</mosaic_0001>

<llo_original>
// kernel: tpu_custom_call.1
$region0: #{tpu_custom_call.1}
  #allocation0 [shape = 'u32[]', space=smem, size = 0x4, offset = 0x4, fixed_abs, tag = 'smem constant byte address 0x4 - core index']
  #allocation1 [shape = 'u32[144,128]{1,0:T(1,128)}', space=vmem, size = 0x12000, scoped, tag = 'internal scratch']
  #allocation2 [shape = 'f32[16,128]{1,0:T(8,128)}', space=vmem, size = 0x2000, scoped, tag = 'scratch operand']
  %s0 = inlined_call_operand.hbm [shape: bf16[16,128], index: 0, kind: input, shape index: {}]
  %s1 = inlined_call_operand.hbm [shape: bf16[128,128], index: 1, kind: input, shape index: {}]
  %s2 = inlined_call_operand.vmem [shape: f32[1,128], index: 2, kind: input, shape index: {}]
  %s3 = inlined_call_operand.hbm [shape: bf16[128,128], index: 3, kind: input, shape index: {}]
  %s4 = inlined_call_operand.vmem [shape: f32[1,128], index: 4, kind: input, shape index: {}]
  %s5 = inlined_call_operand.hbm [shape: f32[16,128], index: 5, kind: output, shape index: {}]
  %s6 = sld [smem:[#allocation0]]
  $region50: #{tpu_custom_call.1} parent=0
    _
  %s8 = ssub.s32 1, %s6
  %s9 = scalar_select 0, %s8, %s6
  $region1: #{tpu_custom_call.1} parent=0
    #allocation3 [shape = 'u8[4096]{0}', space=vmem, size = 0x1000, scoped, tag = 'input window, operand 0, single buffered']
    #allocation4 [shape = 's32[1]{0}', space=sflag, size = 0x4, scoped, tag = 'scoped memory for tpu_custom_call.1']
    #allocation5 [shape = 's32[1]{0}', space=sflag, size = 0x4, scoped, tag = 'scoped memory for tpu_custom_call.1']
    #allocation6 [shape = 'u8[32768]{0}', space=vmem, size = 0x8000, scoped, tag = 'input window, operand 1, single buffered']
    #allocation7 [shape = 's32[1]{0}', space=sflag, size = 0x4, scoped, tag = 'scoped memory for tpu_custom_call.1']
    #allocation8 [shape = 'u8[32768]{0}', space=vmem, size = 0x8000, scoped, tag = 'input window, operand 3, single buffered']
    #allocation9 [shape = 'u8[8192]{0}', space=vmem, size = 0x2000, scoped, tag = 'output window, operand 0, single buffered']
    %10 = vsyncpa [#allocation4], 0
    %11 = vsyncpa [#allocation7], 0
    %12 = vsyncpa [#allocation5], 0
    // Predicated region
    $region2: #{tpu_custom_call.1} parent=1 // pred_check
      _
    $region3: #{tpu_custom_call.1} parent=1 // pred_check_branch
      %14 = sbr.rel (0) target = $region5
    $region4: #{tpu_custom_call.1} parent=1 // pred_region
      %s16 = ssub.s32 128, 128
      %17 = vsyncadd [#allocation4], %s16
      %s18 = sshll.u32 [#allocation3], 4
      %s19 = int_to_ptr.vmem [resolvable:$true] %s18
      %24 = dma.hbm_to_vmem [thread:$0]  %s0, 128, %s19, [#allocation4], 64, 64, 4
    $region5: #{tpu_custom_call.1} parent=1 // pred_fallthru
      _
    // Predicated region
    $region6: #{tpu_custom_call.1} parent=1 // pred_check
      _
    $region7: #{tpu_custom_call.1} parent=1 // pred_check_branch
      %26 = sbr.rel (0) target = $region9
    $region8: #{tpu_custom_call.1} parent=1 // pred_region
      %s28 = ssub.s32 1024, 1024
      %29 = vsyncadd [#allocation7], %s28
      %s30 = sshll.u32 [#allocation6], 4
      %s31 = int_to_ptr.vmem [resolvable:$true] %s30
      %36 = dma.hbm_to_vmem [thread:$0]  %s1, 1024, %s31, [#allocation7], 64, 64, 4
    $region9: #{tpu_custom_call.1} parent=1 // pred_fallthru
      _
    // Predicated region
    $region10: #{tpu_custom_call.1} parent=1 // pred_check
      _
    $region11: #{tpu_custom_call.1} parent=1 // pred_check_branch
      %38 = sbr.rel (0) target = $region13
    $region12: #{tpu_custom_call.1} parent=1 // pred_region
      _
    $region13: #{tpu_custom_call.1} parent=1 // pred_fallthru
      _
    // Predicated region
    $region14: #{tpu_custom_call.1} parent=1 // pred_check
      _
    $region15: #{tpu_custom_call.1} parent=1 // pred_check_branch
      %40 = sbr.rel (0) target = $region17
    $region16: #{tpu_custom_call.1} parent=1 // pred_region
      %s42 = ssub.s32 1024, 1024
      %43 = vsyncadd [#allocation7], %s42
      %s44 = sshll.u32 [#allocation8], 4
      %s45 = int_to_ptr.vmem [resolvable:$true] %s44
      %50 = dma.hbm_to_vmem [thread:$0]  %s3, 1024, %s45, [#allocation7], 64, 64, 4
    $region17: #{tpu_custom_call.1} parent=1 // pred_fallthru
      _
    // Predicated region
    $region18: #{tpu_custom_call.1} parent=1 // pred_check
      _
    $region19: #{tpu_custom_call.1} parent=1 // pred_check_branch
      %52 = sbr.rel (0) target = $region21
    $region20: #{tpu_custom_call.1} parent=1 // pred_region
      _
    $region21: #{tpu_custom_call.1} parent=1 // pred_fallthru
      _
    // Predicated region
    $region22: #{tpu_custom_call.1} parent=1 // pred_check
      _
    $region23: #{tpu_custom_call.1} parent=1 // pred_check_branch
      %54 = sbr.rel (0) target = $region25
    $region24: #{tpu_custom_call.1} parent=1 // pred_region
      %55 = dma.done [#allocation4], 128
    $region25: #{tpu_custom_call.1} parent=1 // pred_fallthru
      _
    // Predicated region
    $region26: #{tpu_custom_call.1} parent=1 // pred_check
      _
    $region27: #{tpu_custom_call.1} parent=1 // pred_check_branch
      %57 = sbr.rel (0) target = $region29
    $region28: #{tpu_custom_call.1} parent=1 // pred_region
      %58 = dma.done [#allocation7], 1024
    $region29: #{tpu_custom_call.1} parent=1 // pred_fallthru
      _
    // Predicated region
    $region30: #{tpu_custom_call.1} parent=1 // pred_check
      _
    $region31: #{tpu_custom_call.1} parent=1 // pred_check_branch
      %60 = sbr.rel (0) target = $region33
    $region32: #{tpu_custom_call.1} parent=1 // pred_region
      %61 = dma.done [#allocation7], 1024
    $region33: #{tpu_custom_call.1} parent=1 // pred_fallthru
      _
    %p63 = scmp.eq.s32.totalorder 0, 0
    // Predicated region
    $region34: #{tpu_custom_call.1} parent=1 // pred_check
      %p64 = pneg %p63
    $region35: #{tpu_custom_call.1} parent=1 // pred_check_branch
      %66 = sbr.rel (%p64) target = $region37
    $region36: #{tpu_custom_call.1} parent=1 // pred_region
      %67 = vst [vmem:[#allocation2] sm:$0xff] 0.0
      %68 = vst [vmem:[#allocation2 + $0x8] sm:$0xff] 0.0
    $region37: #{tpu_custom_call.1} parent=1 // pred_fallthru
      _
    %v69 = vld [vmem:[#allocation3] sm:$0xf]
    %v70 = vld [vmem:[#allocation3 + $0x4] sm:$0xf]
    %v71 = vld [vmem:[#allocation6] sm:$0xf]
    %v72 = vld [vmem:[#allocation6 + $0x4] sm:$0xf]
    %v73 = vld [vmem:[#allocation6 + $0x8] sm:$0xf]
    %v74 = vld [vmem:[#allocation6 + $0xc] sm:$0xf]
    %v75 = vld [vmem:[#allocation6 + $0x10] sm:$0xf]
    %v76 = vld [vmem:[#allocation6 + $0x14] sm:$0xf]
    %v77 = vld [vmem:[#allocation6 + $0x18] sm:$0xf]
    %v78 = vld [vmem:[#allocation6 + $0x1c] sm:$0xf]
    %v79 = vld [vmem:[#allocation6 + $0x20] sm:$0xf]
    %v80 = vld [vmem:[#allocation6 + $0x24] sm:$0xf]
    %v81 = vld [vmem:[#allocation6 + $0x28] sm:$0xf]
    %v82 = vld [vmem:[#allocation6 + $0x2c] sm:$0xf]
    %v83 = vld [vmem:[#allocation6 + $0x30] sm:$0xf]
    %v84 = vld [vmem:[#allocation6 + $0x34] sm:$0xf]
    %v85 = vld [vmem:[#allocation6 + $0x38] sm:$0xf]
    %v86 = vld [vmem:[#allocation6 + $0x3c] sm:$0xf]
    %v87 = vld [vmem:[%s2] sm:$0x1]
    %v89 = vlaneseq
    %v90 = vshrl.u32 %v89, 7
    %v91 = vsub.s32 0, %v90
    %v92 = vrot.slane %v87, %v91
    %v96 = vunpack.c.l.b16 %v69
    %v97 = vunpack.c.l.b16 %v70
    %v98 = vpack.c.b16 %v97, %v96
    %v116 = vunpack.c.l.b16 %v71
    %v117 = vunpack.c.l.b16 %v72
    %v118 = vunpack.c.l.b16 %v73
    %v119 = vunpack.c.l.b16 %v74
    %v120 = vunpack.c.l.b16 %v75
    %v121 = vunpack.c.l.b16 %v76
    %v122 = vunpack.c.l.b16 %v77
    %v123 = vunpack.c.l.b16 %v78
    %v124 = vunpack.c.l.b16 %v79
    %v125 = vunpack.c.l.b16 %v80
    %v126 = vunpack.c.l.b16 %v81
    %v127 = vunpack.c.l.b16 %v82
    %v128 = vunpack.c.l.b16 %v83
    %v129 = vunpack.c.l.b16 %v84
    %v130 = vunpack.c.l.b16 %v85
    %v131 = vunpack.c.l.b16 %v86
    %v132 = vpack.c.b16 %v117, %v116
    %v133 = vpack.c.b16 %v119, %v118
    %v134 = vpack.c.b16 %v121, %v120
    %v135 = vpack.c.b16 %v123, %v122
    %v136 = vpack.c.b16 %v125, %v124
    %v137 = vpack.c.b16 %v127, %v126
    %v138 = vpack.c.b16 %v129, %v128
    %v139 = vpack.c.b16 %v131, %v130
    %148 = vmatprep.subr.bf16.mxu0 0
    %149 = vmatpush1.bf16.msra.mxu0 %v132
    %150 = vmatprep.subr.bf16.mxu0 0
    %151 = vmatpush1.bf16.msra.mxu0 %v133
    %152 = vmatprep.subr.bf16.mxu0 0
    %153 = vmatpush1.bf16.msra.mxu0 %v134
    %154 = vmatprep.subr.bf16.mxu0 0
    %155 = vmatpush1.bf16.msra.mxu0 %v135
    %156 = vmatprep.subr.bf16.mxu0 0
    %157 = vmatpush1.bf16.msra.mxu0 %v136
    %158 = vmatprep.subr.bf16.mxu0 0
    %159 = vmatpush1.bf16.msra.mxu0 %v137
    %160 = vmatprep.subr.bf16.mxu0 0
    %161 = vmatpush1.bf16.msra.mxu0 %v138
    %162 = vmatprep.subr.bf16.mxu0 0
    %163 = vmatpush1.bf16.msra.mxu0 %v139
    %164 = vmatprep.subr.bf16.mxu0 0
    %165 = vmatpush1.bf16.msra.mxu0 0
    %166 = vmatprep.subr.bf16.mxu0 0
    %167 = vmatpush1.bf16.msra.mxu0 0
    %168 = vmatprep.subr.bf16.mxu0 0
    %169 = vmatpush1.bf16.msra.mxu0 0
    %170 = vmatprep.subr.bf16.mxu0 0
    %171 = vmatpush1.bf16.msra.mxu0 0
    %172 = vmatprep.subr.bf16.mxu0 0
    %173 = vmatpush1.bf16.msra.mxu0 0
    %174 = vmatprep.subr.bf16.mxu0 0
    %175 = vmatpush1.bf16.msra.mxu0 0
    %176 = vmatprep.subr.bf16.mxu0 0
    %177 = vmatpush1.bf16.msra.mxu0 0
    %178 = vmatprep.subr.bf16.mxu0 0
    %179 = vmatpush1.bf16.msra.mxu0 0
    %180 = vmatprep.mubr.bf16.mxu0 0
    %181 = vmatmul.mubr.bf16.gmra.mrb[0].mxu0 %v98
    %v182 = vpop.f32.mrb[0].mxu0
    %v183 = vadd.f32 %v92, %v182
    %v184 = vpop.f32.mrb[0].mxu0
    %v185 = vpop.f32.mrb[0].mxu0
    %v186 = vadd.f32 %v92, %v185
    %v187 = vpop.f32.mrb[0].mxu0
    %188 = vdwg.mxu0
    %v189 = vmul.f32 %v183, 0.5
    %v190 = vmul.f32 %v186, 0.5
    %v191 = vmul.f32 %v183, 0.70710677
    %v192 = vmul.f32 %v186, 0.70710677
    %v193 = verf.f32.pop %v191
    %v194 = verf.f32.pop %v192
    %v195 = vadd.f32 %v193, 1.0
    %v196 = vadd.f32 %v194, 1.0
    %v197 = vmul.f32 %v189, %v195
    %v198 = vmul.f32 %v190, %v196
    %v199 = vld [vmem:[#allocation2] sm:$0xff]
    %v200 = vld [vmem:[#allocation2 + $0x8] sm:$0xff]
    %v201 = vpack.c.bf16 %v198, %v197
    %v202 = vld [vmem:[#allocation8] sm:$0xf]
    %v203 = vld [vmem:[#allocation8 + $0x4] sm:$0xf]
    %v204 = vld [vmem:[#allocation8 + $0x8] sm:$0xf]
    %v205 = vld [vmem:[#allocation8 + $0xc] sm:$0xf]
    %v206 = vld [vmem:[#allocation8 + $0x10] sm:$0xf]
    %v207 = vld [vmem:[#allocation8 + $0x14] sm:$0xf]
    %v208 = vld [vmem:[#allocation8 + $0x18] sm:$0xf]
    %v209 = vld [vmem:[#allocation8 + $0x1c] sm:$0xf]
    %v210 = vld [vmem:[#allocation8 + $0x20] sm:$0xf]
    %v211 = vld [vmem:[#allocation8 + $0x24] sm:$0xf]
    %v212 = vld [vmem:[#allocation8 + $0x28] sm:$0xf]
    %v213 = vld [vmem:[#allocation8 + $0x2c] sm:$0xf]
    %v214 = vld [vmem:[#allocation8 + $0x30] sm:$0xf]
    %v215 = vld [vmem:[#allocation8 + $0x34] sm:$0xf]
    %v216 = vld [vmem:[#allocation8 + $0x38] sm:$0xf]
    %v217 = vld [vmem:[#allocation8 + $0x3c] sm:$0xf]
    %v234 = vunpack.c.l.b16 %v202
    %v235 = vunpack.c.l.b16 %v203
    %v236 = vunpack.c.l.b16 %v204
    %v237 = vunpack.c.l.b16 %v205
    %v238 = vunpack.c.l.b16 %v206
    %v239 = vunpack.c.l.b16 %v207
    %v240 = vunpack.c.l.b16 %v208
    %v241 = vunpack.c.l.b16 %v209
    %v242 = vunpack.c.l.b16 %v210
    %v243 = vunpack.c.l.b16 %v211
    %v244 = vunpack.c.l.b16 %v212
    %v245 = vunpack.c.l.b16 %v213
    %v246 = vunpack.c.l.b16 %v214
    %v247 = vunpack.c.l.b16 %v215
    %v248 = vunpack.c.l.b16 %v216
    %v249 = vunpack.c.l.b16 %v217
    %v250 = vpack.c.b16 %v235, %v234
    %v251 = vpack.c.b16 %v237, %v236
    %v252 = vpack.c.b16 %v239, %v238
    %v253 = vpack.c.b16 %v241, %v240
    %v254 = vpack.c.b16 %v243, %v242
    %v255 = vpack.c.b16 %v245, %v244
    %v256 = vpack.c.b16 %v247, %v246
    %v257 = vpack.c.b16 %v249, %v248
    %266 = vmatprep.subr.bf16.mxu0 0
    %267 = vmatpush1.bf16.msra.mxu0 %v250
    %268 = vmatprep.subr.bf16.mxu0 0
    %269 = vmatpush1.bf16.msra.mxu0 %v251
    %270 = vmatprep.subr.bf16.mxu0 0
    %271 = vmatpush1.bf16.msra.mxu0 %v252
    %272 = vmatprep.subr.bf16.mxu0 0
    %273 = vmatpush1.bf16.msra.mxu0 %v253
    %274 = vmatprep.subr.bf16.mxu0 0
    %275 = vmatpush1.bf16.msra.mxu0 %v254
    %276 = vmatprep.subr.bf16.mxu0 0
    %277 = vmatpush1.bf16.msra.mxu0 %v255
    %278 = vmatprep.subr.bf16.mxu0 0
    %279 = vmatpush1.bf16.msra.mxu0 %v256
    %280 = vmatprep.subr.bf16.mxu0 0
    %281 = vmatpush1.bf16.msra.mxu0 %v257
    %282 = vmatprep.subr.bf16.mxu0 0
    %283 = vmatpush1.bf16.msra.mxu0 0
    %284 = vmatprep.subr.bf16.mxu0 0
    %285 = vmatpush1.bf16.msra.mxu0 0
    %286 = vmatprep.subr.bf16.mxu0 0
    %287 = vmatpush1.bf16.msra.mxu0 0
    %288 = vmatprep.subr.bf16.mxu0 0
    %289 = vmatpush1.bf16.msra.mxu0 0
    %290 = vmatprep.subr.bf16.mxu0 0
    %291 = vmatpush1.bf16.msra.mxu0 0
    %292 = vmatprep.subr.bf16.mxu0 0
    %293 = vmatpush1.bf16.msra.mxu0 0
    %294 = vmatprep.subr.bf16.mxu0 0
    %295 = vmatpush1.bf16.msra.mxu0 0
    %296 = vmatprep.subr.bf16.mxu0 0
    %297 = vmatpush1.bf16.msra.mxu0 0
    %298 = vmatprep.mubr.bf16.mxu0 0
    %299 = vmatmul.mubr.bf16.gmra.mrb[0].mxu0 %v201
    %v300 = vpop.f32.mrb[0].mxu0
    %v301 = vadd.f32 0.0, %v300
    %v302 = vpop.f32.mrb[0].mxu0
    %v303 = vpop.f32.mrb[0].mxu0
    %v304 = vadd.f32 0.0, %v303
    %v305 = vpop.f32.mrb[0].mxu0
    %306 = vdwg.mxu0
    %v307 = vadd.f32 %v199, %v301
    %v308 = vadd.f32 %v200, %v304
    %309 = vst [vmem:[#allocation2] sm:$0xff] %v307
    %310 = vst [vmem:[#allocation2 + $0x8] sm:$0xff] %v308
    // Predicated region
    $region38: #{tpu_custom_call.1} parent=1 // pred_check
      %p311 = pneg %p63
    $region39: #{tpu_custom_call.1} parent=1 // pred_check_branch
      %313 = sbr.rel (%p311) target = $region41
    $region40: #{tpu_custom_call.1} parent=1 // pred_region
      %v314 = vld [vmem:[#allocation2] sm:$0xff]
      %v315 = vld [vmem:[#allocation2 + $0x8] sm:$0xff]
      %v316 = vld [vmem:[%s4] sm:$0x1]
      %v318 = vlaneseq
      %v319 = vshrl.u32 %v318, 7
      %v320 = vsub.s32 0, %v319
      %v321 = vrot.slane %v316, %v320
      %v323 = vadd.f32 %v314, %v321
      %v324 = vadd.f32 %v315, %v321
      %325 = vst [vmem:[#allocation9] sm:$0xff] %v323
      %326 = vst [vmem:[#allocation9 + $0x8] sm:$0xff] %v324
    $region41: #{tpu_custom_call.1} parent=1 // pred_fallthru
      _
    // Predicated region
    $region42: #{tpu_custom_call.1} parent=1 // pred_check
      _
    $region43: #{tpu_custom_call.1} parent=1 // pred_check_branch
      %328 = sbr.rel (0) target = $region45
    $region44: #{tpu_custom_call.1} parent=1 // pred_region
      %s330 = ssub.s32 256, 256
      %331 = vsyncadd [#allocation5], %s330
      %s332 = sshll.u32 [#allocation9], 4
      %s333 = int_to_ptr.vmem [resolvable:$true] %s332
      %338 = dma.vmem_to_hbm [thread:$0]  %s333, 256, %s5, [#allocation5], 128, 128, 8
    $region45: #{tpu_custom_call.1} parent=1 // pred_fallthru
      _
    // Predicated region
    $region46: #{tpu_custom_call.1} parent=1 // pred_check
      _
    $region47: #{tpu_custom_call.1} parent=1 // pred_check_branch
      %340 = sbr.rel (0) target = $region49
    $region48: #{tpu_custom_call.1} parent=1 // pred_region
      %341 = dma.done [#allocation5], 256
    $region49: #{tpu_custom_call.1} parent=1 // pred_fallthru
      _
    %342 = vsyncpa [#allocation4], 1
    %343 = vsyncpa [#allocation7], 1
    %344 = vsyncpa [#allocation5], 1

</llo_original>
